<compile_context>
chip_gen: v7x
topology: tpu7x:2x2x1
jax: 0.10.0
libtpu: 0.0.40
codegen_flags: <defaults>
</compile_context>

<pallas_src>
import functools

import jax
import jax.numpy as jnp
from jax.experimental import pallas as pl
from jax.experimental.pallas import tpu as pltpu


def _round_up(n, m):
    return ((n + m - 1) // m) * m


def _ppo_actor_kernel(xt_ref, w1t_ref, b1t_ref, wht_ref, bht_ref,
                      mu_ref, std_ref, *, chunk):
    # xt_ref : (3, TB)    transposed input block (lane-dense over batch)
    # w1t_ref: (128, 3)   W1^T
    # b1t_ref: (128, 1)   b1 as a column
    # wht_ref: (8, 128)   rows 0/1 = Wmu^T / Wstd^T, rows 2..7 zero (MXU padding)
    # bht_ref: (8, 1)     rows 0/1 = bmu / bstd
    # mu_ref : (1, TB), std_ref: (1, TB)  lane-dense outputs
    w1t = w1t_ref[...]
    b1t = b1t_ref[...]
    wht = wht_ref[...]
    bht = bht_ref[...]
    n_chunks = mu_ref.shape[1] // chunk

    def body(c, carry):
        off = pl.multiple_of(c * chunk, 128)
        xt = xt_ref[:, pl.ds(off, chunk)]                       # (3, chunk)

        # ---- Layer 1 (Linear(3,128)+ReLU) as three VPU broadcast-FMAs:
        # w1t[:, k:k+1] is lane-broadcast, xt[k:k+1, :] is a cheap
        # sublane(stride-0)-broadcast; result hT is [128, chunk].
        h = (w1t[:, 0:1] * xt[0:1, :]
             + w1t[:, 1:2] * xt[1:2, :]
             + w1t[:, 2:3] * xt[2:3, :]
             + b1t)
        h = jnp.maximum(h, 0.0)                                  # (128, chunk)

        # ---- Fused heads on the MXU: zT[8, chunk] = WhT[8,128] @ hT[128,chunk].
        z = jnp.dot(wht, h, preferred_element_type=jnp.float32) + bht

        z_mu = z[0:1, :]                                         # (1, chunk)
        z_sd = z[1:2, :]                                         # (1, chunk)

        # Per-row activations on dense [1, chunk] rows (EUP work is minimal).
        mu_ref[:, pl.ds(off, chunk)] = (jnp.tanh(z_mu) * 2.0).astype(mu_ref.dtype)
        # Numerically stable softplus, identical to jax.nn.softplus.
        sp = jnp.log1p(jnp.exp(-jnp.abs(z_sd))) + jnp.maximum(z_sd, 0.0)
        std_ref[:, pl.ds(off, chunk)] = sp.astype(std_ref.dtype)
        return carry

    jax.lax.fori_loop(0, n_chunks, body, 0, unroll=True)


def prepare_params(params):
    """One-time conversion of raw (torch-layout) params into kernel layout."""
    w1, b1, wmu, bmu, wstd, bstd = params
    w1t = jnp.asarray(w1.T, jnp.float32)                    # (128, 3)
    b1t = jnp.asarray(b1, jnp.float32).reshape(128, 1)      # (128, 1)
    wh = jnp.concatenate([wmu, wstd], axis=1).T             # (2, 128)
    bh = jnp.concatenate([bmu, bstd], axis=1).T              # (2, 1)
    wht = jnp.zeros((8, 128), jnp.float32).at[:2, :].set(wh)
    bht = jnp.zeros((8, 1), jnp.float32).at[:2, :].set(bh)
    return (w1t, b1t, wht, bht)


def ppo_actor_forward(x, kernel_params, block_b=2048):
    """x: [B, 3] float32. Returns (mu [B, 1], std [B, 1])."""
    w1t, b1t, wht, bht = kernel_params
    B = x.shape[0]

    # Batch tile: multiple of 128 (lane-dense layout). Prefer >=2 blocks so
    # the ("parallel",) batch axis can land on both v7x TensorCores.
    b128 = _round_up(max(B, 1), 128)
    block_b = _round_up(block_b, 128)
    if b128 <= 128:
        tb = 128
    elif b128 <= 2 * block_b:
        tb = _round_up(pl.cdiv(b128, 2), 128)
    else:
        tb = block_b
    b_pad = _round_up(B, tb)
    grid = b_pad // tb

    # In-kernel lane chunk (keeps hT[128, chunk] within vreg budget).
    if tb <= 512:
        chunk = tb
    elif tb % 512 == 0:
        chunk = 512
    elif tb % 256 == 0:
        chunk = 256
    else:
        chunk = 128

    # Lane-dense transposed input; zero-pad the ragged tail (padded rows only
    # compute relu(b1)/tanh/softplus and are sliced off below).
    # TODO(synk): for very large B, replace the pad with a scalar-prefetch
    # batch length + in-kernel tail mask to avoid the wrapper-side copy.
    xt = x.T                                                  # (3, B)
    if b_pad != B:
        xt = jnp.pad(xt, ((0, 0), (0, b_pad - B)))

    kernel = functools.partial(_ppo_actor_kernel, chunk=chunk)

    mu_t, std_t = pl.pallas_call(
        kernel,
        out_shape=(jax.ShapeDtypeStruct((1, b_pad), jnp.float32),
                   jax.ShapeDtypeStruct((1, b_pad), jnp.float32)),
        grid_spec=pltpu.PrefetchScalarGridSpec(
            num_scalar_prefetch=0,
            grid=(grid,),
            in_specs=[
                pl.BlockSpec((3, tb), lambda i: (0, i)),      # xT: blocked over batch
                pl.BlockSpec((128, 3), lambda i: (0, 0)),     # weights stay VMEM-resident
                pl.BlockSpec((128, 1), lambda i: (0, 0)),
                pl.BlockSpec((8, 128), lambda i: (0, 0)),
                pl.BlockSpec((8, 1), lambda i: (0, 0)),
            ],
            out_specs=[
                pl.BlockSpec((1, tb), lambda i: (0, i)),      # mu row (lane-dense)
                pl.BlockSpec((1, tb), lambda i: (0, i)),      # std row (lane-dense)
            ],
        ),
        compiler_params=pltpu.CompilerParams(
            dimension_semantics=("parallel",)),               # v7x: split batch blocks across TCs
    )(xt, w1t, b1t, wht, bht)

    mu = mu_t[:, :B].T                                        # (B, 1)
    std = std_t[:, :B].T                                      # (B, 1)
    return mu, std


def init_params(key):
    """Deterministic init mimicking torch.nn.Linear default U[-1/sqrt(fan_in), ...].

    Raw layout: weights [in_features, out_features]; biases [1, out_features].
    """
    k = jax.random.split(key, 6)

    def lin(kw, kb, fan_in, fan_out):
        bound = 1.0 / jnp.sqrt(fan_in)
        w = jax.random.uniform(kw, (fan_in, fan_out), jnp.float32, -bound, bound)
        b = jax.random.uniform(kb, (1, fan_out), jnp.float32, -bound, bound)
        return w, b

    w1, b1 = lin(k[0], k[1], 3, 128)
    wmu, bmu = lin(k[2], k[3], 128, 1)
    wstd, bstd = lin(k[4], k[5], 128, 1)
    return (w1, b1, wmu, bmu, wstd, bstd)


def reference_forward(x, params):
    w1, b1, wmu, bmu, wstd, bstd = params
    h = jnp.maximum(x @ w1 + b1, 0.0)
    mu = jnp.tanh(h @ wmu + bmu) * 2.0
    std = jax.nn.softplus(h @ wstd + bstd)
    return mu, std


if __name__ == "__main__":
    key = jax.random.PRNGKey(0)
    pkey, xkey1, xkey2 = jax.random.split(key, 3)
    raw_params = init_params(pkey)
    kparams = prepare_params(raw_params)

    # Small batch: single 128-wide grid block.
    B = 8
    x = jax.random.normal(xkey1, (B, 3), jnp.float32)
    mu, std = ppo_actor_forward(x, kparams)
    jax.block_until_ready((mu, std))
    mu_ref, std_ref = reference_forward(x, raw_params)
    assert mu.shape == (B, 1) and std.shape == (B, 1)
    assert jnp.allclose(mu, mu_ref, atol=1e-5, rtol=1e-5)
    assert jnp.allclose(std, std_ref, atol=1e-5, rtol=1e-5)

    # Ragged batch with several grid blocks: exercises zero-padding and the
    # multi-block "parallel" batch axis (3 blocks of 128).
    B2 = 300
    x2 = jax.random.normal(xkey2, (B2, 3), jnp.float32)
    mu2, std2 = ppo_actor_forward(x2, kparams, block_b=128)
    jax.block_until_ready((mu2, std2))
    mu2_ref, std2_ref = reference_forward(x2, raw_params)
    assert mu2.shape == (B2, 1) and std2.shape == (B2, 1)
    assert jnp.allclose(mu2, mu2_ref, atol=1e-5, rtol=1e-5)
    assert jnp.allclose(std2, std2_ref, atol=1e-5, rtol=1e-5)

    print("KERNEL_OK")
</pallas_src>

<mosaic_0001>
module attributes {stable_mosaic.version = 11 : i64} {
  func.func @_ppo_actor_kernel(%arg0: i32, %arg1: memref<3x128xf32, #tpu.memory_space<vmem>>, %arg2: memref<128x3xf32, #tpu.memory_space<vmem>>, %arg3: memref<128x1xf32, #tpu.memory_space<vmem>>, %arg4: memref<8x128xf32, #tpu.memory_space<vmem>>, %arg5: memref<8x1xf32, #tpu.memory_space<vmem>>, %arg6: memref<1x128xf32, #tpu.memory_space<vmem>>, %arg7: memref<1x128xf32, #tpu.memory_space<vmem>>) attributes {dimension_semantics = [#tpu.dimension_semantics<parallel>], iteration_bounds = array<i64: 1>, scalar_prefetch = 0 : i64, scratch_operands = 0 : i64, tpu.core_type = #tpu.core_type<tc>, window_params = [{transform_indices = @transform_0, window_bounds = array<i64: 3, 128>}, {pipeline_mode = #tpu.pipeline_mode<synchronous>, transform_indices = @transform_1, window_bounds = array<i64: 128, 3>}, {pipeline_mode = #tpu.pipeline_mode<synchronous>, transform_indices = @transform_2, window_bounds = array<i64: 128, 1>}, {pipeline_mode = #tpu.pipeline_mode<synchronous>, transform_indices = @transform_3, window_bounds = array<i64: 8, 128>}, {pipeline_mode = #tpu.pipeline_mode<synchronous>, transform_indices = @transform_4, window_bounds = array<i64: 8, 1>}, {transform_indices = @transform_5, window_bounds = array<i64: 1, 128>}, {transform_indices = @transform_6, window_bounds = array<i64: 1, 128>}]} {
    %c0 = arith.constant 0 : index
    %c0_0 = arith.constant 0 : index
    %0 = vector.load %arg2[%c0, %c0_0] : memref<128x3xf32, #tpu.memory_space<vmem>>, vector<128x3xf32>
    %c0_1 = arith.constant 0 : index
    %c0_2 = arith.constant 0 : index
    %1 = vector.load %arg3[%c0_1, %c0_2] : memref<128x1xf32, #tpu.memory_space<vmem>>, vector<128x1xf32>
    %c0_3 = arith.constant 0 : index
    %c0_4 = arith.constant 0 : index
    %2 = vector.load %arg4[%c0_3, %c0_4] : memref<8x128xf32, #tpu.memory_space<vmem>>, vector<8x128xf32>
    %c0_5 = arith.constant 0 : index
    %c0_6 = arith.constant 0 : index
    %3 = vector.load %arg5[%c0_5, %c0_6] : memref<8x1xf32, #tpu.memory_space<vmem>>, vector<8x1xf32>
    %c0_i32 = arith.constant 0 : i32
    %c128_i32 = arith.constant 128 : i32
    %4 = arith.muli %c0_i32, %c128_i32 : i32
    %5 = tpu.assume_multiple %4, 128 : i32
    %c0_7 = arith.constant 0 : index
    %6 = arith.index_cast %5 : i32 to index
    %7 = vector.load %arg1[%c0_7, %6] : memref<3x128xf32, #tpu.memory_space<vmem>>, vector<3x128xf32>
    %8 = vector.extract_strided_slice %0 {offsets = [0, 0], sizes = [128, 1], strides = [1, 1]} : vector<128x3xf32> to vector<128x1xf32>
    %9 = vector.extract_strided_slice %7 {offsets = [0, 0], sizes = [1, 128], strides = [1, 1]} : vector<3x128xf32> to vector<1x128xf32>
    %10 = vector.broadcast %8 : vector<128x1xf32> to vector<128x128xf32>
    %11 = vector.broadcast %9 : vector<1x128xf32> to vector<128x128xf32>
    %12 = arith.mulf %10, %11 : vector<128x128xf32>
    %13 = vector.extract_strided_slice %0 {offsets = [0, 1], sizes = [128, 1], strides = [1, 1]} : vector<128x3xf32> to vector<128x1xf32>
    %14 = vector.extract_strided_slice %7 {offsets = [1, 0], sizes = [1, 128], strides = [1, 1]} : vector<3x128xf32> to vector<1x128xf32>
    %15 = vector.broadcast %13 : vector<128x1xf32> to vector<128x128xf32>
    %16 = vector.broadcast %14 : vector<1x128xf32> to vector<128x128xf32>
    %17 = arith.mulf %15, %16 : vector<128x128xf32>
    %18 = arith.addf %12, %17 : vector<128x128xf32>
    %19 = vector.extract_strided_slice %0 {offsets = [0, 2], sizes = [128, 1], strides = [1, 1]} : vector<128x3xf32> to vector<128x1xf32>
    %20 = vector.extract_strided_slice %7 {offsets = [2, 0], sizes = [1, 128], strides = [1, 1]} : vector<3x128xf32> to vector<1x128xf32>
    %21 = vector.broadcast %19 : vector<128x1xf32> to vector<128x128xf32>
    %22 = vector.broadcast %20 : vector<1x128xf32> to vector<128x128xf32>
    %23 = arith.mulf %21, %22 : vector<128x128xf32>
    %24 = arith.addf %18, %23 : vector<128x128xf32>
    %25 = vector.broadcast %1 : vector<128x1xf32> to vector<128x128xf32>
    %26 = arith.addf %24, %25 : vector<128x128xf32>
    %cst = arith.constant 0.000000e+00 : f32
    %27 = vector.broadcast %cst : f32 to vector<128x128xf32>
    %28 = arith.maximumf %26, %27 : vector<128x128xf32>
    %cst_8 = arith.constant dense<0.000000e+00> : vector<8x128xf32>
    %29 = tpu.matmul %2, %28, %cst_8 {dimension_numbers = #tpu.dot_dimension_numbers<[1], [0], [0], [1], [0, 0, 1, 1], [], []>} : vector<8x128xf32>, vector<128x128xf32>, vector<8x128xf32> -> vector<8x128xf32>
    %30 = vector.broadcast %3 : vector<8x1xf32> to vector<8x128xf32>
    %31 = arith.addf %29, %30 : vector<8x128xf32>
    %32 = vector.extract_strided_slice %31 {offsets = [0, 0], sizes = [1, 128], strides = [1, 1]} : vector<8x128xf32> to vector<1x128xf32>
    %33 = vector.extract_strided_slice %31 {offsets = [1, 0], sizes = [1, 128], strides = [1, 1]} : vector<8x128xf32> to vector<1x128xf32>
    %34 = math.tanh %32 : vector<1x128xf32>
    %cst_9 = arith.constant 2.000000e+00 : f32
    %35 = vector.broadcast %cst_9 : f32 to vector<1x128xf32>
    %36 = arith.mulf %34, %35 : vector<1x128xf32>
    %c0_10 = arith.constant 0 : index
    %37 = arith.index_cast %5 : i32 to index
    %38 = vector.load %arg6[%c0_10, %37] : memref<1x128xf32, #tpu.memory_space<vmem>>, vector<1x128xf32>
    tpu.vector_store %arg6[%c0_10, %37], %36 {strides = array<i32>} : memref<1x128xf32, #tpu.memory_space<vmem>>, vector<1x128xf32>,
    %39 = math.absf %33 : vector<1x128xf32>
    %cst_11 = arith.constant 0.000000e+00 : f32
    %40 = vector.broadcast %cst_11 : f32 to vector<1x128xf32>
    %41 = arith.subf %40, %39 : vector<1x128xf32>
    %42 = math.exp %41 : vector<1x128xf32>
    %43 = math.log1p %42 : vector<1x128xf32>
    %cst_12 = arith.constant 0.000000e+00 : f32
    %44 = vector.broadcast %cst_12 : f32 to vector<1x128xf32>
    %45 = arith.maximumf %33, %44 : vector<1x128xf32>
    %46 = arith.addf %43, %45 : vector<1x128xf32>
    %c0_13 = arith.constant 0 : index
    %47 = arith.index_cast %5 : i32 to index
    %48 = vector.load %arg7[%c0_13, %47] : memref<1x128xf32, #tpu.memory_space<vmem>>, vector<1x128xf32>
    tpu.vector_store %arg7[%c0_13, %47], %46 {strides = array<i32>} : memref<1x128xf32, #tpu.memory_space<vmem>>, vector<1x128xf32>,
    %c1_i32 = arith.constant 1 : i32
    return
  }
  func.func @transform_0(%arg0: i32) -> (i32, i32) {
    %c0_i32 = arith.constant 0 : i32
    %c0_i32_0 = arith.constant 0 : i32
    return %c0_i32, %arg0 : i32, i32
  }
  func.func @transform_1(%arg0: i32) -> (i32, i32) {
    %c0_i32 = arith.constant 0 : i32
    %c0_i32_0 = arith.constant 0 : i32
    %c0_i32_1 = arith.constant 0 : i32
    return %c0_i32, %c0_i32_0 : i32, i32
  }
  func.func @transform_2(%arg0: i32) -> (i32, i32) {
    %c0_i32 = arith.constant 0 : i32
    %c0_i32_0 = arith.constant 0 : i32
    %c0_i32_1 = arith.constant 0 : i32
    return %c0_i32, %c0_i32_0 : i32, i32
  }
  func.func @transform_3(%arg0: i32) -> (i32, i32) {
    %c0_i32 = arith.constant 0 : i32
    %c0_i32_0 = arith.constant 0 : i32
    %c0_i32_1 = arith.constant 0 : i32
    return %c0_i32, %c0_i32_0 : i32, i32
  }
  func.func @transform_4(%arg0: i32) -> (i32, i32) {
    %c0_i32 = arith.constant 0 : i32
    %c0_i32_0 = arith.constant 0 : i32
    %c0_i32_1 = arith.constant 0 : i32
    return %c0_i32, %c0_i32_0 : i32, i32
  }
  func.func @transform_5(%arg0: i32) -> (i32, i32) {
    %c0_i32 = arith.constant 0 : i32
    %c0_i32_0 = arith.constant 0 : i32
    return %c0_i32, %arg0 : i32, i32
  }
  func.func @transform_6(%arg0: i32) -> (i32, i32) {
    %c0_i32 = arith.constant 0 : i32
    %c0_i32_0 = arith.constant 0 : i32
    return %c0_i32, %arg0 : i32, i32
  }
}

</mosaic_0001>

<llo_original>
// kernel: tpu_custom_call.1
$region0: #{tpu_custom_call.1}
  #allocation0 [shape = 'u32[]', space=smem, size = 0x4, offset = 0x4, fixed_abs, tag = 'smem constant byte address 0x4 - core index']
  #allocation1 [shape = 'u32[144,128]{1,0:T(1,128)}', space=vmem, size = 0x12000, scoped, tag = 'internal scratch']
  %s0 = inlined_call_operand.vmem [shape: f32[3,128], index: 0, kind: input, shape index: {}]
  %s1 = inlined_call_operand.vmem [shape: f32[128,3], index: 1, kind: input, shape index: {}]
  %s2 = inlined_call_operand.vmem [shape: f32[128,1], index: 2, kind: input, shape index: {}]
  %s3 = inlined_call_operand.vmem [shape: f32[8,128], index: 3, kind: input, shape index: {}]
  %s4 = inlined_call_operand.vmem [shape: f32[8,1], index: 4, kind: input, shape index: {}]
  %s5 = inlined_call_operand.hbm [shape: f32[1,128], index: 5, kind: output, shape index: {0}]
  %s6 = inlined_call_operand.hbm [shape: f32[1,128], index: 6, kind: output, shape index: {1}]
  %7 = xla_tuple %s5, %s6
  %s8 = sld [smem:[#allocation0]]
  $region38: #{tpu_custom_call.1} parent=0
    _
  %s10 = ssub.s32 1, %s8
  %s11 = scalar_select 0, %s10, %s8
  $region1: #{tpu_custom_call.1} parent=0
    #allocation2 [shape = 'u8[512]{0}', space=vmem, size = 0x400, scoped, tag = 'output window, operand 0, single buffered']
    #allocation3 [shape = 's32[1]{0}', space=sflag, size = 0x4, scoped, tag = 'scoped memory for tpu_custom_call.1']
    #allocation4 [shape = 'u8[512]{0}', space=vmem, size = 0x400, scoped, tag = 'output window, operand 1, single buffered']
    #allocation5 [shape = 's32[1]{0}', space=sflag, size = 0x4, scoped, tag = 'scoped memory for tpu_custom_call.1']
    %12 = vsyncpa [#allocation3], 0
    %13 = vsyncpa [#allocation5], 0
    // Predicated region
    $region2: #{tpu_custom_call.1} parent=1 // pred_check
      _
    $region3: #{tpu_custom_call.1} parent=1 // pred_check_branch
      %15 = sbr.rel (0) target = $region5
    $region4: #{tpu_custom_call.1} parent=1 // pred_region
      _
    $region5: #{tpu_custom_call.1} parent=1 // pred_fallthru
      _
    // Predicated region
    $region6: #{tpu_custom_call.1} parent=1 // pred_check
      _
    $region7: #{tpu_custom_call.1} parent=1 // pred_check_branch
      %17 = sbr.rel (0) target = $region9
    $region8: #{tpu_custom_call.1} parent=1 // pred_region
      _
    $region9: #{tpu_custom_call.1} parent=1 // pred_fallthru
      _
    // Predicated region
    $region10: #{tpu_custom_call.1} parent=1 // pred_check
      _
    $region11: #{tpu_custom_call.1} parent=1 // pred_check_branch
      %19 = sbr.rel (0) target = $region13
    $region12: #{tpu_custom_call.1} parent=1 // pred_region
      _
    $region13: #{tpu_custom_call.1} parent=1 // pred_fallthru
      _
    // Predicated region
    $region14: #{tpu_custom_call.1} parent=1 // pred_check
      _
    $region15: #{tpu_custom_call.1} parent=1 // pred_check_branch
      %21 = sbr.rel (0) target = $region17
    $region16: #{tpu_custom_call.1} parent=1 // pred_region
      _
    $region17: #{tpu_custom_call.1} parent=1 // pred_fallthru
      _
    // Predicated region
    $region18: #{tpu_custom_call.1} parent=1 // pred_check
      _
    $region19: #{tpu_custom_call.1} parent=1 // pred_check_branch
      %23 = sbr.rel (0) target = $region21
    $region20: #{tpu_custom_call.1} parent=1 // pred_region
      _
    $region21: #{tpu_custom_call.1} parent=1 // pred_fallthru
      _
    %v24 = vld [vmem:[%s1] sm:$0xff]
    %v25 = vld [vmem:[%s1 + $0x8] sm:$0xff]
    %v26 = vld [vmem:[%s1 + $0x10] sm:$0xff]
    %v27 = vld [vmem:[%s1 + $0x18] sm:$0xff]
    %v28 = vld [vmem:[%s1 + $0x20] sm:$0xff]
    %v29 = vld [vmem:[%s1 + $0x28] sm:$0xff]
    %v30 = vld [vmem:[%s1 + $0x30] sm:$0xff]
    %v31 = vld [vmem:[%s1 + $0x38] sm:$0xff]
    %v32 = vld [vmem:[%s1 + $0x40] sm:$0xff]
    %v33 = vld [vmem:[%s1 + $0x48] sm:$0xff]
    %v34 = vld [vmem:[%s1 + $0x50] sm:$0xff]
    %v35 = vld [vmem:[%s1 + $0x58] sm:$0xff]
    %v36 = vld [vmem:[%s1 + $0x60] sm:$0xff]
    %v37 = vld [vmem:[%s1 + $0x68] sm:$0xff]
    %v38 = vld [vmem:[%s1 + $0x70] sm:$0xff]
    %v39 = vld [vmem:[%s1 + $0x78] sm:$0xff]
    %v40 = vld [vmem:[%s2] sm:$0xff]
    %v41 = vld [vmem:[%s2 + $0x8] sm:$0xff]
    %v42 = vld [vmem:[%s2 + $0x10] sm:$0xff]
    %v43 = vld [vmem:[%s2 + $0x18] sm:$0xff]
    %v44 = vld [vmem:[%s2 + $0x20] sm:$0xff]
    %v45 = vld [vmem:[%s2 + $0x28] sm:$0xff]
    %v46 = vld [vmem:[%s2 + $0x30] sm:$0xff]
    %v47 = vld [vmem:[%s2 + $0x38] sm:$0xff]
    %v48 = vld [vmem:[%s2 + $0x40] sm:$0xff]
    %v49 = vld [vmem:[%s2 + $0x48] sm:$0xff]
    %v50 = vld [vmem:[%s2 + $0x50] sm:$0xff]
    %v51 = vld [vmem:[%s2 + $0x58] sm:$0xff]
    %v52 = vld [vmem:[%s2 + $0x60] sm:$0xff]
    %v53 = vld [vmem:[%s2 + $0x68] sm:$0xff]
    %v54 = vld [vmem:[%s2 + $0x70] sm:$0xff]
    %v55 = vld [vmem:[%s2 + $0x78] sm:$0xff]
    %v56 = vld [vmem:[%s3] sm:$0xff]
    %v57 = vld [vmem:[%s4] sm:$0xff]
    %v58 = vld [vmem:[%s0] sm:$0x7]
    %60 = vset.pattern.permute.xlu0 0
    %61 = vperm.xlu0 %60, %v24
    %v62 = vpop.permute.xlu0 %61
    %65 = vset.pattern.permute.xlu0 0
    %66 = vperm.xlu0 %65, %v25
    %v67 = vpop.permute.xlu0 %66
    %70 = vset.pattern.permute.xlu0 0
    %71 = vperm.xlu0 %70, %v26
    %v72 = vpop.permute.xlu0 %71
    %75 = vset.pattern.permute.xlu0 0
    %76 = vperm.xlu0 %75, %v27
    %v77 = vpop.permute.xlu0 %76
    %80 = vset.pattern.permute.xlu0 0
    %81 = vperm.xlu0 %80, %v28
    %v82 = vpop.permute.xlu0 %81
    %85 = vset.pattern.permute.xlu0 0
    %86 = vperm.xlu0 %85, %v29
    %v87 = vpop.permute.xlu0 %86
    %90 = vset.pattern.permute.xlu0 0
    %91 = vperm.xlu0 %90, %v30
    %v92 = vpop.permute.xlu0 %91
    %95 = vset.pattern.permute.xlu0 0
    %96 = vperm.xlu0 %95, %v31
    %v97 = vpop.permute.xlu0 %96
    %100 = vset.pattern.permute.xlu0 0
    %101 = vperm.xlu0 %100, %v32
    %v102 = vpop.permute.xlu0 %101
    %105 = vset.pattern.permute.xlu0 0
    %106 = vperm.xlu0 %105, %v33
    %v107 = vpop.permute.xlu0 %106
    %110 = vset.pattern.permute.xlu0 0
    %111 = vperm.xlu0 %110, %v34
    %v112 = vpop.permute.xlu0 %111
    %115 = vset.pattern.permute.xlu0 0
    %116 = vperm.xlu0 %115, %v35
    %v117 = vpop.permute.xlu0 %116
    %120 = vset.pattern.permute.xlu0 0
    %121 = vperm.xlu0 %120, %v36
    %v122 = vpop.permute.xlu0 %121
    %125 = vset.pattern.permute.xlu0 0
    %126 = vperm.xlu0 %125, %v37
    %v127 = vpop.permute.xlu0 %126
    %130 = vset.pattern.permute.xlu0 0
    %131 = vperm.xlu0 %130, %v38
    %v132 = vpop.permute.xlu0 %131
    %135 = vset.pattern.permute.xlu0 0
    %136 = vperm.xlu0 %135, %v39
    %v137 = vpop.permute.xlu0 %136
    %v139 = vlaneseq
    %v140 = vshrl.u32 %v139, 7
    %v141 = vsub.s32 0, %v140
    %v142 = vrot.slane %v58, %v141
    %v143 = vmul.f32 %v62, %v142
    %v144 = vmul.f32 %v67, %v142
    %v145 = vmul.f32 %v72, %v142
    %v146 = vmul.f32 %v77, %v142
    %v147 = vmul.f32 %v82, %v142
    %v148 = vmul.f32 %v87, %v142
    %v149 = vmul.f32 %v92, %v142
    %v150 = vmul.f32 %v97, %v142
    %v151 = vmul.f32 %v102, %v142
    %v152 = vmul.f32 %v107, %v142
    %v153 = vmul.f32 %v112, %v142
    %v154 = vmul.f32 %v117, %v142
    %v155 = vmul.f32 %v122, %v142
    %v156 = vmul.f32 %v127, %v142
    %v157 = vmul.f32 %v132, %v142
    %v158 = vmul.f32 %v137, %v142
    %159 = vset.pattern.permute.xlu0 1
    %160 = vperm.xlu0 %159, %v24
    %v161 = vpop.permute.xlu0 %160
    %163 = vset.pattern.permute.xlu0 1
    %164 = vperm.xlu0 %163, %v25
    %v165 = vpop.permute.xlu0 %164
    %167 = vset.pattern.permute.xlu0 1
    %168 = vperm.xlu0 %167, %v26
    %v169 = vpop.permute.xlu0 %168
    %171 = vset.pattern.permute.xlu0 1
    %172 = vperm.xlu0 %171, %v27
    %v173 = vpop.permute.xlu0 %172
    %175 = vset.pattern.permute.xlu0 1
    %176 = vperm.xlu0 %175, %v28
    %v177 = vpop.permute.xlu0 %176
    %179 = vset.pattern.permute.xlu0 1
    %180 = vperm.xlu0 %179, %v29
    %v181 = vpop.permute.xlu0 %180
    %183 = vset.pattern.permute.xlu0 1
    %184 = vperm.xlu0 %183, %v30
    %v185 = vpop.permute.xlu0 %184
    %187 = vset.pattern.permute.xlu0 1
    %188 = vperm.xlu0 %187, %v31
    %v189 = vpop.permute.xlu0 %188
    %191 = vset.pattern.permute.xlu0 1
    %192 = vperm.xlu0 %191, %v32
    %v193 = vpop.permute.xlu0 %192
    %195 = vset.pattern.permute.xlu0 1
    %196 = vperm.xlu0 %195, %v33
    %v197 = vpop.permute.xlu0 %196
    %199 = vset.pattern.permute.xlu0 1
    %200 = vperm.xlu0 %199, %v34
    %v201 = vpop.permute.xlu0 %200
    %203 = vset.pattern.permute.xlu0 1
    %204 = vperm.xlu0 %203, %v35
    %v205 = vpop.permute.xlu0 %204
    %207 = vset.pattern.permute.xlu0 1
    %208 = vperm.xlu0 %207, %v36
    %v209 = vpop.permute.xlu0 %208
    %211 = vset.pattern.permute.xlu0 1
    %212 = vperm.xlu0 %211, %v37
    %v213 = vpop.permute.xlu0 %212
    %215 = vset.pattern.permute.xlu0 1
    %216 = vperm.xlu0 %215, %v38
    %v217 = vpop.permute.xlu0 %216
    %219 = vset.pattern.permute.xlu0 1
    %220 = vperm.xlu0 %219, %v39
    %v221 = vpop.permute.xlu0 %220
    %v223 = vlaneseq
    %v224 = vshrl.u32 %v223, 7
    %v225 = vsub.s32 1, %v224
    %v226 = vrot.slane %v58, %v225
    %v227 = vmul.f32 %v161, %v226
    %v228 = vmul.f32 %v165, %v226
    %v229 = vmul.f32 %v169, %v226
    %v230 = vmul.f32 %v173, %v226
    %v231 = vmul.f32 %v177, %v226
    %v232 = vmul.f32 %v181, %v226
    %v233 = vmul.f32 %v185, %v226
    %v234 = vmul.f32 %v189, %v226
    %v235 = vmul.f32 %v193, %v226
    %v236 = vmul.f32 %v197, %v226
    %v237 = vmul.f32 %v201, %v226
    %v238 = vmul.f32 %v205, %v226
    %v239 = vmul.f32 %v209, %v226
    %v240 = vmul.f32 %v213, %v226
    %v241 = vmul.f32 %v217, %v226
    %v242 = vmul.f32 %v221, %v226
    %v243 = vadd.f32 %v143, %v227
    %v244 = vadd.f32 %v144, %v228
    %v245 = vadd.f32 %v145, %v229
    %v246 = vadd.f32 %v146, %v230
    %v247 = vadd.f32 %v147, %v231
    %v248 = vadd.f32 %v148, %v232
    %v249 = vadd.f32 %v149, %v233
    %v250 = vadd.f32 %v150, %v234
    %v251 = vadd.f32 %v151, %v235
    %v252 = vadd.f32 %v152, %v236
    %v253 = vadd.f32 %v153, %v237
    %v254 = vadd.f32 %v154, %v238
    %v255 = vadd.f32 %v155, %v239
    %v256 = vadd.f32 %v156, %v240
    %v257 = vadd.f32 %v157, %v241
    %v258 = vadd.f32 %v158, %v242
    %259 = vset.pattern.permute.xlu0 2
    %260 = vperm.xlu0 %259, %v24
    %v261 = vpop.permute.xlu0 %260
    %263 = vset.pattern.permute.xlu0 2
    %264 = vperm.xlu0 %263, %v25
    %v265 = vpop.permute.xlu0 %264
    %267 = vset.pattern.permute.xlu0 2
    %268 = vperm.xlu0 %267, %v26
    %v269 = vpop.permute.xlu0 %268
    %271 = vset.pattern.permute.xlu0 2
    %272 = vperm.xlu0 %271, %v27
    %v273 = vpop.permute.xlu0 %272
    %275 = vset.pattern.permute.xlu0 2
    %276 = vperm.xlu0 %275, %v28
    %v277 = vpop.permute.xlu0 %276
    %279 = vset.pattern.permute.xlu0 2
    %280 = vperm.xlu0 %279, %v29
    %v281 = vpop.permute.xlu0 %280
    %283 = vset.pattern.permute.xlu0 2
    %284 = vperm.xlu0 %283, %v30
    %v285 = vpop.permute.xlu0 %284
    %287 = vset.pattern.permute.xlu0 2
    %288 = vperm.xlu0 %287, %v31
    %v289 = vpop.permute.xlu0 %288
    %291 = vset.pattern.permute.xlu0 2
    %292 = vperm.xlu0 %291, %v32
    %v293 = vpop.permute.xlu0 %292
    %295 = vset.pattern.permute.xlu0 2
    %296 = vperm.xlu0 %295, %v33
    %v297 = vpop.permute.xlu0 %296
    %299 = vset.pattern.permute.xlu0 2
    %300 = vperm.xlu0 %299, %v34
    %v301 = vpop.permute.xlu0 %300
    %303 = vset.pattern.permute.xlu0 2
    %304 = vperm.xlu0 %303, %v35
    %v305 = vpop.permute.xlu0 %304
    %307 = vset.pattern.permute.xlu0 2
    %308 = vperm.xlu0 %307, %v36
    %v309 = vpop.permute.xlu0 %308
    %311 = vset.pattern.permute.xlu0 2
    %312 = vperm.xlu0 %311, %v37
    %v313 = vpop.permute.xlu0 %312
    %315 = vset.pattern.permute.xlu0 2
    %316 = vperm.xlu0 %315, %v38
    %v317 = vpop.permute.xlu0 %316
    %319 = vset.pattern.permute.xlu0 2
    %320 = vperm.xlu0 %319, %v39
    %v321 = vpop.permute.xlu0 %320
    %v323 = vlaneseq
    %v324 = vshrl.u32 %v323, 7
    %v325 = vsub.s32 2, %v324
    %v326 = vrot.slane %v58, %v325
    %v327 = vmul.f32 %v261, %v326
    %v328 = vmul.f32 %v265, %v326
    %v329 = vmul.f32 %v269, %v326
    %v330 = vmul.f32 %v273, %v326
    %v331 = vmul.f32 %v277, %v326
    %v332 = vmul.f32 %v281, %v326
    %v333 = vmul.f32 %v285, %v326
    %v334 = vmul.f32 %v289, %v326
    %v335 = vmul.f32 %v293, %v326
    %v336 = vmul.f32 %v297, %v326
    %v337 = vmul.f32 %v301, %v326
    %v338 = vmul.f32 %v305, %v326
    %v339 = vmul.f32 %v309, %v326
    %v340 = vmul.f32 %v313, %v326
    %v341 = vmul.f32 %v317, %v326
    %v342 = vmul.f32 %v321, %v326
    %v343 = vadd.f32 %v243, %v327
    %v344 = vadd.f32 %v244, %v328
    %v345 = vadd.f32 %v245, %v329
    %v346 = vadd.f32 %v246, %v330
    %v347 = vadd.f32 %v247, %v331
    %v348 = vadd.f32 %v248, %v332
    %v349 = vadd.f32 %v249, %v333
    %v350 = vadd.f32 %v250, %v334
    %v351 = vadd.f32 %v251, %v335
    %v352 = vadd.f32 %v252, %v336
    %v353 = vadd.f32 %v253, %v337
    %v354 = vadd.f32 %v254, %v338
    %v355 = vadd.f32 %v255, %v339
    %v356 = vadd.f32 %v256, %v340
    %v357 = vadd.f32 %v257, %v341
    %v358 = vadd.f32 %v258, %v342
    %360 = vset.pattern.permute.xlu0 0
    %361 = vperm.xlu0 %360, %v40
    %v362 = vpop.permute.xlu0 %361
    %365 = vset.pattern.permute.xlu0 0
    %366 = vperm.xlu0 %365, %v41
    %v367 = vpop.permute.xlu0 %366
    %370 = vset.pattern.permute.xlu0 0
    %371 = vperm.xlu0 %370, %v42
    %v372 = vpop.permute.xlu0 %371
    %375 = vset.pattern.permute.xlu0 0
    %376 = vperm.xlu0 %375, %v43
    %v377 = vpop.permute.xlu0 %376
    %380 = vset.pattern.permute.xlu0 0
    %381 = vperm.xlu0 %380, %v44
    %v382 = vpop.permute.xlu0 %381
    %385 = vset.pattern.permute.xlu0 0
    %386 = vperm.xlu0 %385, %v45
    %v387 = vpop.permute.xlu0 %386
    %390 = vset.pattern.permute.xlu0 0
    %391 = vperm.xlu0 %390, %v46
    %v392 = vpop.permute.xlu0 %391
    %395 = vset.pattern.permute.xlu0 0
    %396 = vperm.xlu0 %395, %v47
    %v397 = vpop.permute.xlu0 %396
    %400 = vset.pattern.permute.xlu0 0
    %401 = vperm.xlu0 %400, %v48
    %v402 = vpop.permute.xlu0 %401
    %405 = vset.pattern.permute.xlu0 0
    %406 = vperm.xlu0 %405, %v49
    %v407 = vpop.permute.xlu0 %406
    %410 = vset.pattern.permute.xlu0 0
    %411 = vperm.xlu0 %410, %v50
    %v412 = vpop.permute.xlu0 %411
    %415 = vset.pattern.permute.xlu0 0
    %416 = vperm.xlu0 %415, %v51
    %v417 = vpop.permute.xlu0 %416
    %420 = vset.pattern.permute.xlu0 0
    %421 = vperm.xlu0 %420, %v52
    %v422 = vpop.permute.xlu0 %421
    %425 = vset.pattern.permute.xlu0 0
    %426 = vperm.xlu0 %425, %v53
    %v427 = vpop.permute.xlu0 %426
    %430 = vset.pattern.permute.xlu0 0
    %431 = vperm.xlu0 %430, %v54
    %v432 = vpop.permute.xlu0 %431
    %435 = vset.pattern.permute.xlu0 0
    %436 = vperm.xlu0 %435, %v55
    %v437 = vpop.permute.xlu0 %436
    %v439 = vadd.f32 %v343, %v362
    %v440 = vadd.f32 %v344, %v367
    %v441 = vadd.f32 %v345, %v372
    %v442 = vadd.f32 %v346, %v377
    %v443 = vadd.f32 %v347, %v382
    %v444 = vadd.f32 %v348, %v387
    %v445 = vadd.f32 %v349, %v392
    %v446 = vadd.f32 %v350, %v397
    %v447 = vadd.f32 %v351, %v402
    %v448 = vadd.f32 %v352, %v407
    %v449 = vadd.f32 %v353, %v412
    %v450 = vadd.f32 %v354, %v417
    %v451 = vadd.f32 %v355, %v422
    %v452 = vadd.f32 %v356, %v427
    %v453 = vadd.f32 %v357, %v432
    %v454 = vadd.f32 %v358, %v437
    %v455 = vmax.f32 %v439, 0.0
    %v456 = vmax.f32 %v440, 0.0
    %v457 = vmax.f32 %v441, 0.0
    %v458 = vmax.f32 %v442, 0.0
    %v459 = vmax.f32 %v443, 0.0
    %v460 = vmax.f32 %v444, 0.0
    %v461 = vmax.f32 %v445, 0.0
    %v462 = vmax.f32 %v446, 0.0
    %v463 = vmax.f32 %v447, 0.0
    %v464 = vmax.f32 %v448, 0.0
    %v465 = vmax.f32 %v449, 0.0
    %v466 = vmax.f32 %v450, 0.0
    %v467 = vmax.f32 %v451, 0.0
    %v468 = vmax.f32 %v452, 0.0
    %v469 = vmax.f32 %v453, 0.0
    %v470 = vmax.f32 %v454, 0.0
    %472 = vset.pattern.permute.xlu0 0
    %473 = vperm.xlu0 %472, %v57
    %v474 = vpop.permute.xlu0 %473
    %476 = vmatprep.subr.mxu0 0.0
    %477 = vmatpush1.msra.mxu0 %v455
    %478 = vmatprep.subr.mxu0 0.0
    %479 = vmatpush1.msra.mxu0 %v456
    %480 = vmatprep.subr.mxu0 0.0
    %481 = vmatpush1.msra.mxu0 %v457
    %482 = vmatprep.subr.mxu0 0.0
    %483 = vmatpush1.msra.mxu0 %v458
    %484 = vmatprep.subr.mxu0 0.0
    %485 = vmatpush1.msra.mxu0 %v459
    %486 = vmatprep.subr.mxu0 0.0
    %487 = vmatpush1.msra.mxu0 %v460
    %488 = vmatprep.subr.mxu0 0.0
    %489 = vmatpush1.msra.mxu0 %v461
    %490 = vmatprep.subr.mxu0 0.0
    %491 = vmatpush1.msra.mxu0 %v462
    %492 = vmatprep.subr.mxu0 0.0
    %493 = vmatpush1.msra.mxu0 %v463
    %494 = vmatprep.subr.mxu0 0.0
    %495 = vmatpush1.msra.mxu0 %v464
    %496 = vmatprep.subr.mxu0 0.0
    %497 = vmatpush1.msra.mxu0 %v465
    %498 = vmatprep.subr.mxu0 0.0
    %499 = vmatpush1.msra.mxu0 %v466
    %500 = vmatprep.subr.mxu0 0.0
    %501 = vmatpush1.msra.mxu0 %v467
    %502 = vmatprep.subr.mxu0 0.0
    %503 = vmatpush1.msra.mxu0 %v468
    %504 = vmatprep.subr.mxu0 0.0
    %505 = vmatpush1.msra.mxu0 %v469
    %506 = vmatprep.subr.mxu0 0.0
    %507 = vmatpush1.msra.mxu0 %v470
    %508 = vmatprep.subr.mxu0 0.0
    %509 = vmatpush1.msra.mxu0 0.0
    %510 = vmatprep.subr.mxu0 0.0
    %511 = vmatpush1.msra.mxu0 0.0
    %512 = vmatprep.subr.mxu0 0.0
    %513 = vmatpush1.msra.mxu0 0.0
    %514 = vmatprep.subr.mxu0 0.0
    %515 = vmatpush1.msra.mxu0 0.0
    %516 = vmatprep.subr.mxu0 0.0
    %517 = vmatpush1.msra.mxu0 0.0
    %518 = vmatprep.subr.mxu0 0.0
    %519 = vmatpush1.msra.mxu0 0.0
    %520 = vmatprep.subr.mxu0 0.0
    %521 = vmatpush1.msra.mxu0 0.0
    %522 = vmatprep.subr.mxu0 0.0
    %523 = vmatpush1.msra.mxu0 0.0
    %524 = vmatprep.subr.mxu0 0.0
    %525 = vmatpush1.msra.mxu0 0.0
    %526 = vmatprep.subr.mxu0 0.0
    %527 = vmatpush1.msra.mxu0 0.0
    %528 = vmatprep.subr.mxu0 0.0
    %529 = vmatpush1.msra.mxu0 0.0
    %530 = vmatprep.subr.mxu0 0.0
    %531 = vmatpush1.msra.mxu0 0.0
    %532 = vmatprep.subr.mxu0 0.0
    %533 = vmatpush1.msra.mxu0 0.0
    %534 = vmatprep.subr.mxu0 0.0
    %535 = vmatpush1.msra.mxu0 0.0
    %536 = vmatprep.subr.mxu0 0.0
    %537 = vmatpush1.msra.mxu0 0.0
    %538 = vmatprep.subr.mxu0 0.0
    %539 = vmatpush1.msra.mxu0 0.0
    %540 = vmatprep.mubr.f32.mxu0 0.0
    %541 = vmatmul.mubr.f32.gmra.mrb[0].mxu0 %v56
    %v542 = vpop.f32.mrb[0].mxu0
    %v543 = vadd.f32 %v474, %v542
    %v544 = vpop.f32.mrb[0].mxu0
    %545 = vdwg.mxu0
    %v546 = vtanh.pop %v543
    %v547 = vmul.f32 %v546, 2.0
    %548 = vst [vmem:[#allocation2] sm:$0x1] %v547
    %v549 = vand.u32 2147483647, %v543
    %v550 = vsub.f32 0.0, %v549
    %v551 = vmul.f32 %v550, 1.442695
    %v552 = vpow.pop %v551
    %v553 = vadd.f32 %v552, 1.0
    %v554 = vlog2.pop %v553
    %v555 = vmul.f32 %v554, 0.6931472
    %v556 = vmul.f32 -0.5, %v552
    %v557 = vadd.f32 %v556, 1.0
    %v558 = vmul.f32 %v557, %v552
    %v559 = vand.u32 2147483647, %v552
    %vm560 = vcmp.lt.f32.partialorder %v559, 0.0004427343
    %v561 = vsel %vm560, %v558, %v555
    %v562 = vmax.f32 %v543, 0.0
    %v563 = vadd.f32 %v561, %v562
    %564 = vst [vmem:[#allocation4 - $0x1] sm:$0x2] %v563
    // Predicated region
    $region22: #{tpu_custom_call.1} parent=1 // pred_check
      _
    $region23: #{tpu_custom_call.1} parent=1 // pred_check_branch
      %566 = sbr.rel (0) target = $region25
    $region24: #{tpu_custom_call.1} parent=1 // pred_region
      %s568 = ssub.s32 16, 16
      %569 = vsyncadd [#allocation3], %s568
      %s571 = sshll.u32 [#allocation2], 4
      %s572 = int_to_ptr.vmem [resolvable:$true] %s571
      %574 = dma.vmem_to_hbm [thread:$0]  %s572, 16, %s5, [#allocation3]
    $region25: #{tpu_custom_call.1} parent=1 // pred_fallthru
      _
    // Predicated region
    $region26: #{tpu_custom_call.1} parent=1 // pred_check
      _
    $region27: #{tpu_custom_call.1} parent=1 // pred_check_branch
      %576 = sbr.rel (0) target = $region29
    $region28: #{tpu_custom_call.1} parent=1 // pred_region
      %s578 = ssub.s32 16, 16
      %579 = vsyncadd [#allocation5], %s578
      %s581 = sshll.u32 [#allocation4], 4
      %s582 = int_to_ptr.vmem [resolvable:$true] %s581
      %584 = dma.vmem_to_hbm [thread:$0]  %s582, 16, %s6, [#allocation5]
    $region29: #{tpu_custom_call.1} parent=1 // pred_fallthru
      _
    // Predicated region
    $region30: #{tpu_custom_call.1} parent=1 // pred_check
      _
    $region31: #{tpu_custom_call.1} parent=1 // pred_check_branch
      %586 = sbr.rel (0) target = $region33
    $region32: #{tpu_custom_call.1} parent=1 // pred_region
      %587 = dma.done [#allocation3], 16
    $region33: #{tpu_custom_call.1} parent=1 // pred_fallthru
      _
    // Predicated region
    $region34: #{tpu_custom_call.1} parent=1 // pred_check
      _
    $region35: #{tpu_custom_call.1} parent=1 // pred_check_branch
      %589 = sbr.rel (0) target = $region37
    $region36: #{tpu_custom_call.1} parent=1 // pred_region
      %590 = dma.done [#allocation5], 16
    $region37: #{tpu_custom_call.1} parent=1 // pred_fallthru
      _
    %591 = vsyncpa [#allocation3], 1
    %592 = vsyncpa [#allocation5], 1

</llo_original>
